<compile_context>
chip_gen: v5e
topology: v5e:2x2
jax: 0.10.0
libtpu: 0.0.40
codegen_flags: <defaults>
</compile_context>

<pallas_src>
import functools

import jax
import jax.numpy as jnp
from jax.experimental import pallas as pl
from jax.experimental.pallas import tpu as pltpu

M_TILE = 512          # row tile for the plain matmuls
NT_TILE = 64          # timesteps per graph-aggregation grid step
ROW_TILE = 1024       # row tile for the elementwise affine kernel
BN_EPS = 1e-5
COMPUTE_DTYPE = jnp.bfloat16


# ----------------------------- Pallas kernels -------------------------------

def _matmul_bias_kernel(a_ref, w_ref, b_ref, o_ref):
    acc = jnp.dot(a_ref[...], w_ref[...], preferred_element_type=jnp.float32)
    o_ref[...] = (acc + b_ref[...]).astype(o_ref.dtype)


def matmul_bias(a, w, b, out_dtype=COMPUTE_DTYPE):
    """(R, K) @ (K, N) + b on the MXU, rows tiled, bf16 in / f32 accumulate."""
    R, K = a.shape
    _, N = w.shape
    tm = min(M_TILE, R)
    return pl.pallas_call(
        _matmul_bias_kernel,
        out_shape=jax.ShapeDtypeStruct((R, N), out_dtype),
        grid=(pl.cdiv(R, tm),),
        in_specs=[
            pl.BlockSpec((tm, K), lambda i: (i, 0)),
            pl.BlockSpec((K, N), lambda i: (0, 0)),
            pl.BlockSpec((1, N), lambda i: (0, 0)),
        ],
        out_specs=pl.BlockSpec((tm, N), lambda i: (i, 0)),
        compiler_params=pltpu.CompilerParams(
            dimension_semantics=("parallel",)),
    )(a.astype(COMPUTE_DTYPE), w.astype(COMPUTE_DTYPE),
      b.reshape(1, N).astype(jnp.float32))


def _affine_kernel(x_ref, s_ref, b_ref, o_ref):
    o_ref[...] = (x_ref[...] * s_ref[...] + b_ref[...]).astype(o_ref.dtype)


def affine(x2d, scale, shift, out_dtype=COMPUTE_DTYPE):
    """Per-channel (last axis) scale/shift, rows tiled."""
    R, C = x2d.shape
    rt = min(ROW_TILE, R)
    return pl.pallas_call(
        _affine_kernel,
        out_shape=jax.ShapeDtypeStruct((R, C), out_dtype),
        grid=(pl.cdiv(R, rt),),
        in_specs=[
            pl.BlockSpec((rt, C), lambda i: (i, 0)),
            pl.BlockSpec((1, C), lambda i: (0, 0)),
            pl.BlockSpec((1, C), lambda i: (0, 0)),
        ],
        out_specs=pl.BlockSpec((rt, C), lambda i: (i, 0)),
        compiler_params=pltpu.CompilerParams(
            dimension_semantics=("parallel",)),
    )(x2d.astype(jnp.float32), scale.reshape(1, C).astype(jnp.float32),
      shift.reshape(1, C).astype(jnp.float32))


def _graph_bn_relu_kernel(y_ref, bt_ref, s_ref, sh_ref, o_ref):
    y = y_ref[...]                                       # (nt, V*K, C) bf16
    bt = bt_ref[...]                                     # (V, V*K)     bf16
    btb = jnp.broadcast_to(bt[None, :, :], (y.shape[0],) + bt.shape)
    acc = jax.lax.dot_general(                           # (nt, V, C) f32
        btb, y, (((2,), (1,)), ((0,), (0,))),
        preferred_element_type=jnp.float32)
    z = acc * s_ref[...] + sh_ref[...]                   # fused BN1
    o_ref[...] = jnp.maximum(z, 0.0).astype(o_ref.dtype)  # fused ReLU


def graph_bn_relu(y3, b_t, scale, shift):
    """y3: (NT, V*K, C) with flat index v*K + k;  b_t[w, v*K+k] = A[k, v, w].
       out[nt, w, c] = relu(BN(sum_j b_t[w, j] * y3[nt, j, c]))."""
    NT, VK, C = y3.shape
    V = b_t.shape[0]
    nt = min(NT_TILE, NT)
    return pl.pallas_call(
        _graph_bn_relu_kernel,
        out_shape=jax.ShapeDtypeStruct((NT, V, C), COMPUTE_DTYPE),
        grid=(pl.cdiv(NT, nt),),
        in_specs=[
            pl.BlockSpec((nt, VK, C), lambda i: (i, 0, 0)),
            pl.BlockSpec((V, VK), lambda i: (0, 0)),
            pl.BlockSpec((1, 1, C), lambda i: (0, 0, 0)),
            pl.BlockSpec((1, 1, C), lambda i: (0, 0, 0)),
        ],
        out_specs=pl.BlockSpec((nt, V, C), lambda i: (i, 0, 0)),
        compiler_params=pltpu.CompilerParams(
            dimension_semantics=("parallel",)),
    )(y3.astype(COMPUTE_DTYPE), b_t.astype(COMPUTE_DTYPE),
      scale.reshape(1, 1, C).astype(jnp.float32),
      shift.reshape(1, 1, C).astype(jnp.float32))


def _tcn_kernel(u_ref, res_ref, w_ref, b_ref, o_ref, *, offsets, rows):
    # 9-tap temporal conv: accumulate 9 shifted-window matmuls in f32.
    acc = jnp.dot(u_ref[0, offsets[0]:offsets[0] + rows, :], w_ref[0],
                  preferred_element_type=jnp.float32)
    for dt in range(1, len(offsets)):
        acc = acc + jnp.dot(u_ref[0, offsets[dt]:offsets[dt] + rows, :],
                            w_ref[dt], preferred_element_type=jnp.float32)
    out = acc + b_ref[...] + res_ref[0].astype(jnp.float32)
    o_ref[0] = jnp.maximum(out, 0.0).astype(o_ref.dtype)


def tcn_res_relu(u, res, wt, bt, stride):
    """u: (NM, T, V, C) post BN1+ReLU.  (9,1) conv, stride along T, pad 4,
    BN2 folded into wt/bt, plus fused residual add + ReLU.  res: (NM, T_out,
    V, C) or None (zero residual)."""
    NM, T, V, C = u.shape
    T_out = (T - 1) // stride + 1
    rows = T_out * V
    u_pad = jnp.pad(u, ((0, 0), (4, 4), (0, 0), (0, 0)))
    Tp = T + 8
    if stride == 1:
        u_flat = u_pad.reshape(NM, Tp * V, C)
        offsets = tuple(dt * V for dt in range(9))
    else:  # stride == 2: split frames by parity so each tap window is contiguous
        u_even = u_pad[:, 0::2].reshape(NM, -1, C)
        u_odd = u_pad[:, 1::2].reshape(NM, -1, C)
        Te = u_even.shape[1] // V
        u_flat = jnp.concatenate([u_even, u_odd], axis=1)
        offsets = tuple((dt // 2) * V if dt % 2 == 0
                        else (Te + (dt - 1) // 2) * V for dt in range(9))
    L = u_flat.shape[1]

    if res is None:
        res_arr = jnp.zeros((1, 1, C), COMPUTE_DTYPE)
        res_spec = pl.BlockSpec((1, 1, C), lambda i: (0, 0, 0))
    else:
        res_arr = res.reshape(NM, rows, C).astype(COMPUTE_DTYPE)
        res_spec = pl.BlockSpec((1, rows, C), lambda i: (i, 0, 0))

    out = pl.pallas_call(
        functools.partial(_tcn_kernel, offsets=offsets, rows=rows),
        out_shape=jax.ShapeDtypeStruct((NM, rows, C), COMPUTE_DTYPE),
        grid=(NM,),
        in_specs=[
            pl.BlockSpec((1, L, C), lambda i: (i, 0, 0)),
            res_spec,
            pl.BlockSpec((9, C, C), lambda i: (0, 0, 0)),
            pl.BlockSpec((1, C), lambda i: (0, 0)),
        ],
        out_specs=pl.BlockSpec((1, rows, C), lambda i: (i, 0, 0)),
        compiler_params=pltpu.CompilerParams(
            dimension_semantics=("parallel",)),
    )(u_flat.astype(COMPUTE_DTYPE), res_arr, wt.astype(COMPUTE_DTYPE),
      bt.reshape(1, C).astype(jnp.float32))
    return out.reshape(NM, T_out, V, C)


def _pool_norm_kernel(x_ref, o_ref):
    x = x_ref[0].astype(jnp.float32)                  # (T*V, C)
    m = jnp.mean(x, axis=0, keepdims=True)            # avg_pool2d over (T, V)
    nrm = jnp.sqrt(jnp.sum(m * m, axis=1, keepdims=True))
    o_ref[0] = m / jnp.maximum(nrm, 1e-12)            # F.normalize(dim=1)


def pool_normalize(x):
    """x: (NM, T*V, C) -> (NM, 1, C)."""
    NM, TV, C = x.shape
    return pl.pallas_call(
        _pool_norm_kernel,
        out_shape=jax.ShapeDtypeStruct((NM, 1, C), jnp.float32),
        grid=(NM,),
        in_specs=[pl.BlockSpec((1, TV, C), lambda i: (i, 0, 0))],
        out_specs=pl.BlockSpec((1, 1, C), lambda i: (i, 0, 0)),
        compiler_params=pltpu.CompilerParams(
            dimension_semantics=("parallel",)),
    )(x)


# --------------------------- parameters / graph ------------------------------

def bn_default(c):
    gamma = jnp.ones((c,), jnp.float32)
    beta = jnp.zeros((c,), jnp.float32)
    mean = jnp.zeros((c,), jnp.float32)
    var = jnp.ones((c,), jnp.float32)
    scale = gamma / jnp.sqrt(var + BN_EPS)
    shift = beta - mean * scale
    return scale, shift


def build_graph(V):
    """Deterministic chain graph, K=3 spatial partitions (self / in / out)."""
    adj = jnp.zeros((V, V), jnp.float32)
    for i in range(V - 1):
        adj = adj.at[i, i + 1].set(1.0).at[i + 1, i].set(1.0)

    def norm(a):
        d = a.sum(axis=0)
        dinv = jnp.where(d > 0, 1.0 / d, 0.0)
        return a * dinv[None, :]

    a0 = jnp.eye(V, dtype=jnp.float32)
    a1 = norm(jnp.tril(adj))
    a2 = norm(jnp.triu(adj))
    return jnp.stack([a0, a1, a2], axis=0)            # (K=3, V, V)


def init_block(key, cin, cout, K, stride, residual):
    k0, k1, k2, k3, k4, k5 = jax.random.split(key, 6)
    p = {"stride": stride, "residual": residual, "cout": cout, "K": K}
    # gcn 1x1 conv: cin -> K*cout (output channel index = k*cout + c)
    p["wg"] = jax.random.normal(k0, (cin, K * cout), jnp.float32) / jnp.sqrt(cin)
    p["bg"] = jax.random.normal(k1, (K * cout,), jnp.float32) * 0.01
    # tcn: BN1 (fused into graph kernel), ReLU, conv (9,1), BN2 folded into conv
    p["bn1_scale"], p["bn1_shift"] = bn_default(cout)
    wt = jax.random.normal(k2, (9, cout, cout), jnp.float32) / jnp.sqrt(9.0 * cout)
    bt = jax.random.normal(k3, (cout,), jnp.float32) * 0.01
    s2, sh2 = bn_default(cout)
    p["wt"] = wt * s2[None, None, :]
    p["bt"] = bt * s2 + sh2
    if residual == "conv":
        wr = jax.random.normal(k4, (cin, cout), jnp.float32) / jnp.sqrt(cin)
        br = jax.random.normal(k5, (cout,), jnp.float32) * 0.01
        sr, shr = bn_default(cout)
        p["wr"] = wr * sr[None, :]
        p["br"] = br * sr + shr
    return p


def init_params(key, in_channels, V, K):
    cfg = [
        (in_channels, 64, 1, "none"),
        (64, 64, 1, "iden"), (64, 64, 1, "iden"), (64, 64, 1, "iden"),
        (64, 128, 2, "conv"), (128, 128, 1, "iden"), (128, 128, 1, "iden"),
        (128, 256, 2, "conv"), (256, 256, 1, "iden"), (256, 256, 1, "iden"),
    ]
    keys = jax.random.split(key, len(cfg))
    blocks = [init_block(k, ci, co, K, s, r)
              for k, (ci, co, s, r) in zip(keys, cfg)]
    dbn_scale, dbn_shift = bn_default(in_channels * V)
    return {
        "A": build_graph(V),
        "blocks": blocks,
        "edge_importance": [jnp.ones((K, V, V), jnp.float32) for _ in cfg],
        "data_bn_scale": dbn_scale,
        "data_bn_shift": dbn_shift,
    }


# ------------------------------- forward pass -------------------------------

def st_gcn_block_forward(x, b_t, p):
    # x: (NM, T, V, Cin) bf16
    NM, T, V, Cin = x.shape
    K = p["K"]
    cout = p["cout"]
    s = p["stride"]
    T_out = (T - 1) // s + 1

    # residual branch (applied to the block input, before the gcn)
    xs = x[:, ::s] if s > 1 else x
    if p["residual"] == "none":
        res = None
    elif p["residual"] == "iden":
        res = xs
    else:  # 1x1 conv (stride s along T) + BN, folded into wr/br
        res = matmul_bias(xs.reshape(NM * T_out * V, Cin), p["wr"], p["br"]
                          ).reshape(NM, T_out, V, cout)

    # gcn: 1x1 conv (cin -> K*cout), then graph aggregation + BN1 + ReLU fused
    y = matmul_bias(x.reshape(NM * T * V, Cin), p["wg"], p["bg"])
    y3 = y.reshape(NM * T, V * K, cout)          # flat index = v*K + k
    u = graph_bn_relu(y3, b_t, p["bn1_scale"], p["bn1_shift"])
    u = u.reshape(NM, T, V, cout)

    # tcn: (9,1) conv (stride s, pad 4) + BN2(folded) + residual add + ReLU
    return tcn_res_relu(u, res, p["wt"], p["bt"], s)


def st_gcn_18_forward(x, params):
    # x: (N, M, T, V, C)   (PyTorch input convention of this module)
    N, M, T, V, C = x.shape
    if T < 10:
        rc = (10 + T - 1) // T
        x = jnp.tile(x, (1, 1, rc, 1, 1))[:, :, :10]
        T = 10

    # data_bn over V*C channels (channel index = v*C + c), inference affine
    x2 = affine(x.reshape(N * M * T, V * C),
                params["data_bn_scale"], params["data_bn_shift"])
    x = x2.reshape(N * M, T, V, C)               # channels-last, bf16

    A = params["A"]
    K = A.shape[0]
    for p, imp in zip(params["blocks"], params["edge_importance"]):
        a_eff = A * imp                                           # (K, V, V)
        b_t = jnp.transpose(a_eff, (2, 1, 0)).reshape(V, V * K)   # [w, v*K+k]
        x = st_gcn_block_forward(x, b_t, p)

    NM, T_f, V_f, C_f = x.shape
    pooled = pool_normalize(x.reshape(NM, T_f * V_f, C_f))        # (NM, 1, C_f)
    return pooled.reshape(N, M, C_f, 1, 1)


# ----------------------------------- main ------------------------------------

if __name__ == "__main__":
    key = jax.random.PRNGKey(0)
    N, M, T, V, C = 2, 1, 8, 16, 3          # T<10 exercises the repeat path
    K = 3
    kx, kp = jax.random.split(key)
    x = jax.random.normal(kx, (N, M, T, V, C), jnp.float32)
    params = init_params(kp, in_channels=C, V=V, K=K)

    out = st_gcn_18_forward(x, params)
    out = jax.block_until_ready(out)

    assert out.shape == (N, M, 256, 1, 1), out.shape
    assert bool(jnp.all(jnp.isfinite(out)))
    print("KERNEL_OK")
</pallas_src>

<mosaic_0001>
module attributes {stable_mosaic.version = 11 : i64} {
  func.func @_affine_kernel(%arg0: i32, %arg1: memref<20x48xf32, #tpu.memory_space<vmem>>, %arg2: memref<1x48xf32, #tpu.memory_space<vmem>>, %arg3: memref<1x48xf32, #tpu.memory_space<vmem>>, %arg4: memref<20x48xbf16, #tpu.memory_space<vmem>>) attributes {dimension_semantics = [#tpu.dimension_semantics<parallel>], iteration_bounds = array<i64: 1>, scalar_prefetch = 0 : i64, scratch_operands = 0 : i64, tpu.core_type = #tpu.core_type<tc>, window_params = [{transform_indices = @transform_0, window_bounds = array<i64: 20, 48>}, {pipeline_mode = #tpu.pipeline_mode<synchronous>, transform_indices = @transform_1, window_bounds = array<i64: 1, 48>}, {pipeline_mode = #tpu.pipeline_mode<synchronous>, transform_indices = @transform_2, window_bounds = array<i64: 1, 48>}, {transform_indices = @transform_3, window_bounds = array<i64: 20, 48>}]} {
    %c0 = arith.constant 0 : index
    %c0_0 = arith.constant 0 : index
    %0 = vector.load %arg1[%c0, %c0_0] : memref<20x48xf32, #tpu.memory_space<vmem>>, vector<20x48xf32>
    %c0_1 = arith.constant 0 : index
    %c0_2 = arith.constant 0 : index
    %1 = vector.load %arg2[%c0_1, %c0_2] : memref<1x48xf32, #tpu.memory_space<vmem>>, vector<1x48xf32>
    %2 = vector.broadcast %1 : vector<1x48xf32> to vector<20x48xf32>
    %3 = arith.mulf %0, %2 : vector<20x48xf32>
    %c0_3 = arith.constant 0 : index
    %c0_4 = arith.constant 0 : index
    %4 = vector.load %arg3[%c0_3, %c0_4] : memref<1x48xf32, #tpu.memory_space<vmem>>, vector<1x48xf32>
    %5 = vector.broadcast %4 : vector<1x48xf32> to vector<20x48xf32>
    %6 = arith.addf %3, %5 : vector<20x48xf32>
    %7 = arith.truncf %6 : vector<20x48xf32> to vector<20x48xbf16>
    %c0_5 = arith.constant 0 : index
    %c0_6 = arith.constant 0 : index
    %8 = vector.load %arg4[%c0_5, %c0_6] : memref<20x48xbf16, #tpu.memory_space<vmem>>, vector<20x48xbf16>
    tpu.vector_store %arg4[%c0_5, %c0_6], %7 {strides = array<i32>} : memref<20x48xbf16, #tpu.memory_space<vmem>>, vector<20x48xbf16>,
    return
  }
  func.func @transform_0(%arg0: i32) -> (i32, i32) {
    %c0_i32 = arith.constant 0 : i32
    %c0_i32_0 = arith.constant 0 : i32
    return %arg0, %c0_i32 : i32, i32
  }
  func.func @transform_1(%arg0: i32) -> (i32, i32) {
    %c0_i32 = arith.constant 0 : i32
    %c0_i32_0 = arith.constant 0 : i32
    %c0_i32_1 = arith.constant 0 : i32
    return %c0_i32, %c0_i32_0 : i32, i32
  }
  func.func @transform_2(%arg0: i32) -> (i32, i32) {
    %c0_i32 = arith.constant 0 : i32
    %c0_i32_0 = arith.constant 0 : i32
    %c0_i32_1 = arith.constant 0 : i32
    return %c0_i32, %c0_i32_0 : i32, i32
  }
  func.func @transform_3(%arg0: i32) -> (i32, i32) {
    %c0_i32 = arith.constant 0 : i32
    %c0_i32_0 = arith.constant 0 : i32
    return %arg0, %c0_i32 : i32, i32
  }
}

</mosaic_0001>

<llo_original>
// kernel: tpu_custom_call.1
$region0: #{tpu_custom_call.1}
  #allocation0 [shape = 'u32[]', space=smem, size = 0x4, offset = 0x4, fixed_abs, tag = 'smem constant byte address 0x4 - core index']
  #allocation1 [shape = 'u32[72,128]{1,0:T(1,128)}', space=vmem, size = 0x9000, scoped, tag = 'internal scratch']
  %s0 = inlined_call_operand.hbm [shape: f32[20,48], index: 0, kind: input, shape index: {}]
  %s1 = inlined_call_operand.hbm [shape: f32[1,48], index: 1, kind: input, shape index: {}]
  %s2 = inlined_call_operand.vmem [shape: f32[1,48], index: 2, kind: input, shape index: {}]
  %s3 = inlined_call_operand.hbm [shape: bf16[20,48], index: 3, kind: output, shape index: {}]
  %s4 = sld [smem:[#allocation0]]
  $region30: #{tpu_custom_call.1} parent=0
    _
  %s6 = ssub.s32 1, %s4
  %s7 = scalar_select 0, %s6, %s4
  $region1: #{tpu_custom_call.1} parent=0
    #allocation2 [shape = 'u8[12288]{0}', space=vmem, size = 0x3000, scoped, tag = 'input window, operand 0, single buffered']
    #allocation3 [shape = 's32[1]{0}', space=sflag, size = 0x4, scoped, tag = 'scoped memory for tpu_custom_call.1']
    #allocation4 [shape = 's32[1]{0}', space=sflag, size = 0x4, scoped, tag = 'scoped memory for tpu_custom_call.1']
    #allocation5 [shape = 'u8[512]{0}', space=vmem, size = 0x400, scoped, tag = 'input window, operand 1, single buffered']
    #allocation6 [shape = 's32[1]{0}', space=sflag, size = 0x4, scoped, tag = 'scoped memory for tpu_custom_call.1']
    #allocation7 [shape = 'u8[6144]{0}', space=vmem, size = 0x1800, scoped, tag = 'output window, operand 0, single buffered']
    %8 = vsyncpa [#allocation3], 0
    %9 = vsyncpa [#allocation6], 0
    %10 = vsyncpa [#allocation4], 0
    // Predicated region
    $region2: #{tpu_custom_call.1} parent=1 // pred_check
      _
    $region3: #{tpu_custom_call.1} parent=1 // pred_check_branch
      %12 = sbr.rel (0) target = $region5
    $region4: #{tpu_custom_call.1} parent=1 // pred_region
      %14 = vsyncadd [#allocation3], 0
      %s15 = sshll.u32 %s0, 4
      %s16 = int_to_ptr.hbm [resolvable:$true] %s15
      %s17 = sshll.u32 [#allocation2], 4
      %s18 = int_to_ptr.vmem [resolvable:$true] %s17
      %23 = dma.hbm_to_vmem [thread:$0]  %s16, 384, %s18, [#allocation3], 128, 128, 8
    $region5: #{tpu_custom_call.1} parent=1 // pred_fallthru
      _
    // Predicated region
    $region6: #{tpu_custom_call.1} parent=1 // pred_check
      _
    $region7: #{tpu_custom_call.1} parent=1 // pred_check_branch
      %25 = sbr.rel (0) target = $region9
    $region8: #{tpu_custom_call.1} parent=1 // pred_region
      %27 = vsyncadd [#allocation6], 0
      %s29 = sshll.u32 %s1, 4
      %s30 = int_to_ptr.hbm [resolvable:$true] %s29
      %s31 = sshll.u32 [#allocation5], 4
      %s32 = int_to_ptr.vmem [resolvable:$true] %s31
      %34 = dma.hbm_to_vmem [thread:$0]  %s30, 16, %s32, [#allocation6]
    $region9: #{tpu_custom_call.1} parent=1 // pred_fallthru
      _
    // Predicated region
    $region10: #{tpu_custom_call.1} parent=1 // pred_check
      _
    $region11: #{tpu_custom_call.1} parent=1 // pred_check_branch
      %36 = sbr.rel (0) target = $region13
    $region12: #{tpu_custom_call.1} parent=1 // pred_region
      _
    $region13: #{tpu_custom_call.1} parent=1 // pred_fallthru
      _
    // Predicated region
    $region14: #{tpu_custom_call.1} parent=1 // pred_check
      _
    $region15: #{tpu_custom_call.1} parent=1 // pred_check_branch
      %38 = sbr.rel (0) target = $region17
    $region16: #{tpu_custom_call.1} parent=1 // pred_region
      %40 = dma.done [#allocation3], 384
    $region17: #{tpu_custom_call.1} parent=1 // pred_fallthru
      _
    // Predicated region
    $region18: #{tpu_custom_call.1} parent=1 // pred_check
      _
    $region19: #{tpu_custom_call.1} parent=1 // pred_check_branch
      %42 = sbr.rel (0) target = $region21
    $region20: #{tpu_custom_call.1} parent=1 // pred_region
      %44 = dma.done [#allocation6], 16
    $region21: #{tpu_custom_call.1} parent=1 // pred_fallthru
      _
    %v45 = vld [vmem:[#allocation2] sm:$0xff]
    %v46 = vld [vmem:[#allocation2 + $0x8] sm:$0xff]
    %v47 = vld [vmem:[#allocation2 + $0x10] sm:$0xf]
    %v48 = vld [vmem:[#allocation5] sm:$0x1]
    %v50 = vperm.slane %v48, 0
    %v52 = vmul.f32 %v45, %v50
    %v53 = vmul.f32 %v46, %v50
    %v54 = vmul.f32 %v47, %v50
    %v55 = vld [vmem:[%s2] sm:$0x1]
    %v57 = vperm.slane %v55, 0
    %v59 = vadd.f32 %v52, %v57
    %v60 = vadd.f32 %v53, %v57
    %v61 = vadd.f32 %v54, %v57
    %v62 = vpack.c.bf16 %v59, %v59
    %v63 = vpack.c.bf16 %v60, %v60
    %v64 = vpack.c.bf16 %v61, %v61
    %vm65 = vcmask 388096
    %66 = vst.msk [vmem:[#allocation7] sm:$0xf] %vm65, %v62
    %67 = vst.msk [vmem:[#allocation7 + $0x4] sm:$0xf] %vm65, %v63
    %vm68 = vcmask 386048
    %69 = vst.msk [vmem:[#allocation7 + $0x8] sm:$0x3] %vm68, %v64
    // Predicated region
    $region22: #{tpu_custom_call.1} parent=1 // pred_check
      _
    $region23: #{tpu_custom_call.1} parent=1 // pred_check_branch
      %71 = sbr.rel (0) target = $region25
    $region24: #{tpu_custom_call.1} parent=1 // pred_region
      %73 = vsyncadd [#allocation4], 0
      %s74 = sshll.u32 [#allocation7], 4
      %s75 = int_to_ptr.vmem [resolvable:$true] %s74
      %s76 = sshll.u32 %s3, 4
      %s77 = int_to_ptr.hbm [resolvable:$true] %s76
      %82 = dma.vmem_to_hbm [thread:$0]  %s75, 192, %s77, [#allocation4], 64, 64, 4
    $region25: #{tpu_custom_call.1} parent=1 // pred_fallthru
      _
    // Predicated region
    $region26: #{tpu_custom_call.1} parent=1 // pred_check
      _
    $region27: #{tpu_custom_call.1} parent=1 // pred_check_branch
      %84 = sbr.rel (0) target = $region29
    $region28: #{tpu_custom_call.1} parent=1 // pred_region
      %86 = dma.done [#allocation4], 192
    $region29: #{tpu_custom_call.1} parent=1 // pred_fallthru
      _
    %87 = vsyncpa [#allocation3], 1
    %88 = vsyncpa [#allocation6], 1
    %89 = vsyncpa [#allocation4], 1

</llo_original>
